<compile_context>
chip_gen: v7x
topology: tpu7x:2x2x1
jax: 0.10.0
libtpu: 0.0.40
codegen_flags: <defaults>
</compile_context>

<pallas_src>
import functools

import jax
import jax.numpy as jnp
from jax.experimental import pallas as pl
from jax.experimental.pallas import tpu as pltpu


def _mlp_kernel(x_ref, w1_ref, b1_ref, w2_ref, b2_ref, o_ref):
    # x_ref : (6, TB)   batch on the lane axis (lane-dense)
    # w1_ref: (100, 6)  PyTorch Linear(6,100).weight layout, VMEM-resident
    # b1_ref: (100, 1)
    # w2_ref: (100, 1)  Linear(100,1).weight transposed (column vector)
    # b2_ref: (1, 1)
    # o_ref : (1, TB)   lane-dense output slab
    x = x_ref[...]
    h = jnp.dot(w1_ref[...], x, preferred_element_type=jnp.float32)   # (100, TB) MXU
    h = jnp.maximum(h + b1_ref[...], 0.0)                             # bias + ReLU (VPU)
    # 100 -> 1 projection: hidden-axis reduce instead of an N=1 matmul.
    y = jnp.sum(h * w2_ref[...], axis=0, keepdims=True)               # (1, TB)
    o_ref[...] = (y + b2_ref[...]).astype(o_ref.dtype)


def _forward_t(x_t, w1, b1_col, w2_col, b2_11, *, block_b):
    """x_t: (6, B) f32 -> (1, B) f32, tiled over the batch (lane) axis."""
    B = x_t.shape[1]
    H = w1.shape[0]

    if B <= block_b:
        tb = B                      # single full block (exempt from 128-divisibility)
    else:
        tb = block_b                # must be a multiple of 128
    grid = (pl.cdiv(B, tb),)

    return pl.pallas_call(
        _mlp_kernel,
        out_shape=jax.ShapeDtypeStruct((1, B), x_t.dtype),
        grid_spec=pltpu.PrefetchScalarGridSpec(
            num_scalar_prefetch=0,
            grid=grid,
            in_specs=[
                pl.BlockSpec((6, tb), lambda i: (0, i)),    # x tile, pipelined
                pl.BlockSpec((H, 6), lambda i: (0, 0)),     # w1, resident
                pl.BlockSpec((H, 1), lambda i: (0, 0)),     # b1, resident
                pl.BlockSpec((H, 1), lambda i: (0, 0)),     # w2 column, resident
                pl.BlockSpec((1, 1), lambda i: (0, 0)),     # b2, resident
            ],
            out_specs=pl.BlockSpec((1, tb), lambda i: (0, i)),
        ),
        compiler_params=pltpu.CompilerParams(
            dimension_semantics=("parallel",),
        ),
    )(x_t, w1, b1_col, w2_col, b2_11)


@functools.partial(jax.jit, static_argnames=("block_b",))
def lucas_machine_forward(x, w1, b1, w2, b2, *, block_b=8192):
    """Forward pass matching the PyTorch module.

    x : (B, 6) f32
    w1: (100, 6), b1: (100,)   -- PyTorch Linear(6, 100) layout
    w2: (1, 100), b2: (1,)     -- PyTorch Linear(100, 1) layout
    returns (B, 1) f32

    block_b: batch tile (lane) size; multiple of 128 (8192 is safe on
    v5e/v6e/v7x VMEM budgets; sweep 8k/16k/32k on v5e/v6e for peak).
    """
    B = x.shape[0]
    # Layout plumbing (wrapper-side): present batch on the lane axis.
    x_t = x.T                              # (6, B)
    b1_col = b1.reshape(-1, 1)             # (100, 1)
    w2_col = w2.reshape(-1, 1)             # (100, 1)  == w2.T since w2 is (1, 100)
    b2_11 = b2.reshape(1, 1)               # (1, 1)
    y_t = _forward_t(x_t, w1, b1_col, w2_col, b2_11, block_b=block_b)  # (1, B)
    return y_t.reshape(B, 1)


def init_params(key):
    """PyTorch nn.Linear default init (U[-1/sqrt(fan_in), +1/sqrt(fan_in)]),
    stored in PyTorch layout: W1 (100, 6), b1 (100,), W2 (1, 100), b2 (1,)."""
    k1, k2, k3, k4 = jax.random.split(key, 4)
    in1, h, out = 6, 100, 1
    bnd1 = 1.0 / jnp.sqrt(jnp.float32(in1))
    bnd2 = 1.0 / jnp.sqrt(jnp.float32(h))
    w1 = jax.random.uniform(k1, (h, in1), jnp.float32, -bnd1, bnd1)
    b1 = jax.random.uniform(k2, (h,), jnp.float32, -bnd1, bnd1)
    w2 = jax.random.uniform(k3, (out, h), jnp.float32, -bnd2, bnd2)
    b2 = jax.random.uniform(k4, (out,), jnp.float32, -bnd2, bnd2)
    return w1, b1, w2, b2


def reference_forward(x, w1, b1, w2, b2):
    h = jnp.maximum(x @ w1.T + b1, 0.0)
    return h @ w2.T + b2


if __name__ == "__main__":
    key = jax.random.PRNGKey(0)
    kx, kp = jax.random.split(key)
    w1, b1, w2, b2 = init_params(kp)

    # Small demo shape consistent with the module: (B, 6).
    B = 8
    x = jax.random.normal(kx, (B, 6), jnp.float32)
    out = jax.block_until_ready(lucas_machine_forward(x, w1, b1, w2, b2))
    ref = reference_forward(x, w1, b1, w2, b2)
    assert out.shape == (B, 1), out.shape
    assert jnp.allclose(out, ref, atol=1e-5, rtol=1e-5), "mismatch vs JAX reference (B=8)"

    # Exercise the multi-step grid path (3 tiles, weights resident across steps).
    B2 = 384
    x2 = jax.random.normal(jax.random.PRNGKey(1), (B2, 6), jnp.float32)
    out2 = jax.block_until_ready(lucas_machine_forward(x2, w1, b1, w2, b2, block_b=128))
    ref2 = reference_forward(x2, w1, b1, w2, b2)
    assert out2.shape == (B2, 1), out2.shape
    assert jnp.allclose(out2, ref2, atol=1e-5, rtol=1e-5), "mismatch vs JAX reference (B=384)"

    print("KERNEL_OK")
</pallas_src>

<mosaic_0001>
module attributes {stable_mosaic.version = 11 : i64} {
  func.func @_mlp_kernel(%arg0: i32, %arg1: memref<6x8xf32, #tpu.memory_space<vmem>>, %arg2: memref<100x6xf32, #tpu.memory_space<vmem>>, %arg3: memref<100x1xf32, #tpu.memory_space<vmem>>, %arg4: memref<100x1xf32, #tpu.memory_space<vmem>>, %arg5: memref<1x1xf32, #tpu.memory_space<vmem>>, %arg6: memref<1x8xf32, #tpu.memory_space<vmem>>) attributes {dimension_semantics = [#tpu.dimension_semantics<parallel>], iteration_bounds = array<i64: 1>, scalar_prefetch = 0 : i64, scratch_operands = 0 : i64, tpu.core_type = #tpu.core_type<tc>, window_params = [{transform_indices = @transform_0, window_bounds = array<i64: 6, 8>}, {pipeline_mode = #tpu.pipeline_mode<synchronous>, transform_indices = @transform_1, window_bounds = array<i64: 100, 6>}, {pipeline_mode = #tpu.pipeline_mode<synchronous>, transform_indices = @transform_2, window_bounds = array<i64: 100, 1>}, {pipeline_mode = #tpu.pipeline_mode<synchronous>, transform_indices = @transform_3, window_bounds = array<i64: 100, 1>}, {pipeline_mode = #tpu.pipeline_mode<synchronous>, transform_indices = @transform_4, window_bounds = array<i64: 1, 1>}, {transform_indices = @transform_5, window_bounds = array<i64: 1, 8>}]} {
    %c0 = arith.constant 0 : index
    %c0_0 = arith.constant 0 : index
    %0 = vector.load %arg1[%c0, %c0_0] : memref<6x8xf32, #tpu.memory_space<vmem>>, vector<6x8xf32>
    %c0_1 = arith.constant 0 : index
    %c0_2 = arith.constant 0 : index
    %1 = vector.load %arg2[%c0_1, %c0_2] : memref<100x6xf32, #tpu.memory_space<vmem>>, vector<100x6xf32>
    %cst = arith.constant dense<0.000000e+00> : vector<100x8xf32>
    %2 = tpu.matmul %1, %0, %cst {dimension_numbers = #tpu.dot_dimension_numbers<[1], [0], [0], [1], [0, 0, 1, 1], [], []>} : vector<100x6xf32>, vector<6x8xf32>, vector<100x8xf32> -> vector<100x8xf32>
    %c0_3 = arith.constant 0 : index
    %c0_4 = arith.constant 0 : index
    %3 = vector.load %arg3[%c0_3, %c0_4] : memref<100x1xf32, #tpu.memory_space<vmem>>, vector<100x1xf32>
    %4 = vector.broadcast %3 : vector<100x1xf32> to vector<100x8xf32>
    %5 = arith.addf %2, %4 : vector<100x8xf32>
    %cst_5 = arith.constant 0.000000e+00 : f32
    %6 = vector.broadcast %cst_5 : f32 to vector<100x8xf32>
    %7 = arith.maximumf %5, %6 : vector<100x8xf32>
    %c0_6 = arith.constant 0 : index
    %c0_7 = arith.constant 0 : index
    %8 = vector.load %arg4[%c0_6, %c0_7] : memref<100x1xf32, #tpu.memory_space<vmem>>, vector<100x1xf32>
    %9 = vector.broadcast %8 : vector<100x1xf32> to vector<100x8xf32>
    %10 = arith.mulf %7, %9 : vector<100x8xf32>
    %cst_8 = arith.constant dense<0.000000e+00> : vector<8xf32>
    %11 = vector.multi_reduction <add>, %10, %cst_8 [0] : vector<100x8xf32> to vector<8xf32>
    %12 = vector.shape_cast %11 : vector<8xf32> to vector<1x8xf32>
    %c0_9 = arith.constant 0 : index
    %c0_10 = arith.constant 0 : index
    %13 = vector.load %arg5[%c0_9, %c0_10] : memref<1x1xf32, #tpu.memory_space<vmem>>, vector<1x1xf32>
    %14 = vector.broadcast %13 : vector<1x1xf32> to vector<1x8xf32>
    %15 = arith.addf %12, %14 : vector<1x8xf32>
    %c0_11 = arith.constant 0 : index
    %c0_12 = arith.constant 0 : index
    %16 = vector.load %arg6[%c0_11, %c0_12] : memref<1x8xf32, #tpu.memory_space<vmem>>, vector<1x8xf32>
    tpu.vector_store %arg6[%c0_11, %c0_12], %15 {strides = array<i32>} : memref<1x8xf32, #tpu.memory_space<vmem>>, vector<1x8xf32>,
    return
  }
  func.func @transform_0(%arg0: i32) -> (i32, i32) {
    %c0_i32 = arith.constant 0 : i32
    %c0_i32_0 = arith.constant 0 : i32
    return %c0_i32, %arg0 : i32, i32
  }
  func.func @transform_1(%arg0: i32) -> (i32, i32) {
    %c0_i32 = arith.constant 0 : i32
    %c0_i32_0 = arith.constant 0 : i32
    %c0_i32_1 = arith.constant 0 : i32
    return %c0_i32, %c0_i32_0 : i32, i32
  }
  func.func @transform_2(%arg0: i32) -> (i32, i32) {
    %c0_i32 = arith.constant 0 : i32
    %c0_i32_0 = arith.constant 0 : i32
    %c0_i32_1 = arith.constant 0 : i32
    return %c0_i32, %c0_i32_0 : i32, i32
  }
  func.func @transform_3(%arg0: i32) -> (i32, i32) {
    %c0_i32 = arith.constant 0 : i32
    %c0_i32_0 = arith.constant 0 : i32
    %c0_i32_1 = arith.constant 0 : i32
    return %c0_i32, %c0_i32_0 : i32, i32
  }
  func.func @transform_4(%arg0: i32) -> (i32, i32) {
    %c0_i32 = arith.constant 0 : i32
    %c0_i32_0 = arith.constant 0 : i32
    %c0_i32_1 = arith.constant 0 : i32
    return %c0_i32, %c0_i32_0 : i32, i32
  }
  func.func @transform_5(%arg0: i32) -> (i32, i32) {
    %c0_i32 = arith.constant 0 : i32
    %c0_i32_0 = arith.constant 0 : i32
    return %c0_i32, %arg0 : i32, i32
  }
}

</mosaic_0001>

<llo_original>
// kernel: lucas_machine_forward.1
$region0: #{lucas_machine_forward.1}
  #allocation0 [shape = 'u32[]', space=smem, size = 0x4, offset = 0x4, fixed_abs, tag = 'smem constant byte address 0x4 - core index']
  #allocation1 [shape = 'u32[144,128]{1,0:T(1,128)}', space=vmem, size = 0x12000, scoped, tag = 'internal scratch']
  #allocation2 [shape = 'f32[1,1]{1,0:T(1,128)S(1)}', space=vmem, size = 0x200, scoped, tag = 'scoped memory for lucas_machine_forward.1']
  %s0 = inlined_call_operand.vmem [shape: f32[6,8], index: 0, kind: input, shape index: {}]
  %s1 = inlined_call_operand.vmem [shape: f32[100,6], index: 1, kind: input, shape index: {}]
  %s2 = inlined_call_operand.vmem [shape: f32[100,1], index: 2, kind: input, shape index: {}]
  %s3 = inlined_call_operand.vmem [shape: f32[100,1], index: 3, kind: input, shape index: {}]
  %s4 = inlined_call_operand.<no memory space> [shape: f32[1,1], index: 4, kind: input, shape index: {}]
  %s5 = inlined_call_operand.hbm [shape: f32[1,8], index: 5, kind: output, shape index: {}]
  %s6 = sld [smem:[#allocation0]]
  $region30: #{lucas_machine_forward.1} parent=0
    _
  %s8 = ssub.s32 1, %s6
  %s9 = scalar_select 0, %s8, %s6
  %v10 = vstv %s4
  %11 = vst [vmem:[#allocation2] sm:$0x1] %v10
  $region1: #{lucas_machine_forward.1} parent=0
    #allocation3 [shape = 'u8[512]{0}', space=vmem, size = 0x400, scoped, tag = 'output window, operand 0, single buffered']
    #allocation4 [shape = 's32[1]{0}', space=sflag, size = 0x4, scoped, tag = 'scoped memory for lucas_machine_forward.1']
    %12 = vsyncpa [#allocation4], 0
    // Predicated region
    $region2: #{lucas_machine_forward.1} parent=1 // pred_check
      _
    $region3: #{lucas_machine_forward.1} parent=1 // pred_check_branch
      %14 = sbr.rel (0) target = $region5
    $region4: #{lucas_machine_forward.1} parent=1 // pred_region
      _
    $region5: #{lucas_machine_forward.1} parent=1 // pred_fallthru
      _
    // Predicated region
    $region6: #{lucas_machine_forward.1} parent=1 // pred_check
      _
    $region7: #{lucas_machine_forward.1} parent=1 // pred_check_branch
      %16 = sbr.rel (0) target = $region9
    $region8: #{lucas_machine_forward.1} parent=1 // pred_region
      _
    $region9: #{lucas_machine_forward.1} parent=1 // pred_fallthru
      _
    // Predicated region
    $region10: #{lucas_machine_forward.1} parent=1 // pred_check
      _
    $region11: #{lucas_machine_forward.1} parent=1 // pred_check_branch
      %18 = sbr.rel (0) target = $region13
    $region12: #{lucas_machine_forward.1} parent=1 // pred_region
      _
    $region13: #{lucas_machine_forward.1} parent=1 // pred_fallthru
      _
    // Predicated region
    $region14: #{lucas_machine_forward.1} parent=1 // pred_check
      _
    $region15: #{lucas_machine_forward.1} parent=1 // pred_check_branch
      %20 = sbr.rel (0) target = $region17
    $region16: #{lucas_machine_forward.1} parent=1 // pred_region
      _
    $region17: #{lucas_machine_forward.1} parent=1 // pred_fallthru
      _
    // Predicated region
    $region18: #{lucas_machine_forward.1} parent=1 // pred_check
      _
    $region19: #{lucas_machine_forward.1} parent=1 // pred_check_branch
      %22 = sbr.rel (0) target = $region21
    $region20: #{lucas_machine_forward.1} parent=1 // pred_region
      _
    $region21: #{lucas_machine_forward.1} parent=1 // pred_fallthru
      _
    %v23 = vld [vmem:[%s0] sm:$0x3f]
    %v24 = vld [vmem:[%s1] sm:$0xff]
    %v25 = vld [vmem:[%s1 + $0x8] sm:$0xff]
    %v26 = vld [vmem:[%s1 + $0x10] sm:$0xff]
    %v27 = vld [vmem:[%s1 + $0x18] sm:$0xff]
    %v28 = vld [vmem:[%s1 + $0x20] sm:$0xff]
    %v29 = vld [vmem:[%s1 + $0x28] sm:$0xff]
    %v30 = vld [vmem:[%s1 + $0x30] sm:$0xff]
    %v31 = vld [vmem:[%s1 + $0x38] sm:$0xff]
    %v32 = vld [vmem:[%s1 + $0x40] sm:$0xff]
    %v33 = vld [vmem:[%s1 + $0x48] sm:$0xff]
    %v34 = vld [vmem:[%s1 + $0x50] sm:$0xff]
    %v35 = vld [vmem:[%s1 + $0x58] sm:$0xff]
    %v36 = vld [vmem:[%s1 + $0x60] sm:$0xf]
    %v37 = vld [vmem:[%s2] sm:$0xff]
    %v38 = vld [vmem:[%s2 + $0x8] sm:$0xff]
    %v39 = vld [vmem:[%s2 + $0x10] sm:$0xff]
    %v40 = vld [vmem:[%s2 + $0x18] sm:$0xff]
    %v41 = vld [vmem:[%s2 + $0x20] sm:$0xff]
    %v42 = vld [vmem:[%s2 + $0x28] sm:$0xff]
    %v43 = vld [vmem:[%s2 + $0x30] sm:$0xff]
    %v44 = vld [vmem:[%s2 + $0x38] sm:$0xff]
    %v45 = vld [vmem:[%s2 + $0x40] sm:$0xff]
    %v46 = vld [vmem:[%s2 + $0x48] sm:$0xff]
    %v47 = vld [vmem:[%s2 + $0x50] sm:$0xff]
    %v48 = vld [vmem:[%s2 + $0x58] sm:$0xff]
    %v49 = vld [vmem:[%s2 + $0x60] sm:$0xf]
    %51 = vset.pattern.permute.xlu0 0
    %52 = vperm.xlu0 %51, %v37
    %v53 = vpop.permute.xlu0 %52
    %56 = vset.pattern.permute.xlu0 0
    %57 = vperm.xlu0 %56, %v38
    %v58 = vpop.permute.xlu0 %57
    %61 = vset.pattern.permute.xlu0 0
    %62 = vperm.xlu0 %61, %v39
    %v63 = vpop.permute.xlu0 %62
    %66 = vset.pattern.permute.xlu0 0
    %67 = vperm.xlu0 %66, %v40
    %v68 = vpop.permute.xlu0 %67
    %71 = vset.pattern.permute.xlu0 0
    %72 = vperm.xlu0 %71, %v41
    %v73 = vpop.permute.xlu0 %72
    %76 = vset.pattern.permute.xlu0 0
    %77 = vperm.xlu0 %76, %v42
    %v78 = vpop.permute.xlu0 %77
    %81 = vset.pattern.permute.xlu0 0
    %82 = vperm.xlu0 %81, %v43
    %v83 = vpop.permute.xlu0 %82
    %86 = vset.pattern.permute.xlu0 0
    %87 = vperm.xlu0 %86, %v44
    %v88 = vpop.permute.xlu0 %87
    %91 = vset.pattern.permute.xlu0 0
    %92 = vperm.xlu0 %91, %v45
    %v93 = vpop.permute.xlu0 %92
    %96 = vset.pattern.permute.xlu0 0
    %97 = vperm.xlu0 %96, %v46
    %v98 = vpop.permute.xlu0 %97
    %101 = vset.pattern.permute.xlu0 0
    %102 = vperm.xlu0 %101, %v47
    %v103 = vpop.permute.xlu0 %102
    %106 = vset.pattern.permute.xlu0 0
    %107 = vperm.xlu0 %106, %v48
    %v108 = vpop.permute.xlu0 %107
    %111 = vset.pattern.permute.xlu0 0
    %112 = vperm.xlu0 %111, %v49
    %v113 = vpop.permute.xlu0 %112
    %vm115 = vcmask 48128
    %v117 = vsel %vm115, %v24, 0
    %v120 = vsel %vm115, %v25, 0
    %v123 = vsel %vm115, %v26, 0
    %v126 = vsel %vm115, %v27, 0
    %v129 = vsel %vm115, %v28, 0
    %v132 = vsel %vm115, %v29, 0
    %v135 = vsel %vm115, %v30, 0
    %v138 = vsel %vm115, %v31, 0
    %v141 = vsel %vm115, %v32, 0
    %v144 = vsel %vm115, %v33, 0
    %v147 = vsel %vm115, %v34, 0
    %v150 = vsel %vm115, %v35, 0
    %v153 = vsel %vm115, %v36, 0
    %vm155 = vcmask 1045504
    %v157 = vsel %vm155, %v23, 0
    %159 = vmatprep.subr.mxu0 0.0
    %160 = vmatpush1.msra.mxu0 %v157
    %161 = vmatprep.subr.mxu0 0.0
    %162 = vmatpush1.msra.mxu0 0.0
    %163 = vmatprep.subr.mxu0 0.0
    %164 = vmatpush1.msra.mxu0 0.0
    %165 = vmatprep.subr.mxu0 0.0
    %166 = vmatpush1.msra.mxu0 0.0
    %167 = vmatprep.subr.mxu0 0.0
    %168 = vmatpush1.msra.mxu0 0.0
    %169 = vmatprep.subr.mxu0 0.0
    %170 = vmatpush1.msra.mxu0 0.0
    %171 = vmatprep.subr.mxu0 0.0
    %172 = vmatpush1.msra.mxu0 0.0
    %173 = vmatprep.subr.mxu0 0.0
    %174 = vmatpush1.msra.mxu0 0.0
    %175 = vmatprep.subr.mxu0 0.0
    %176 = vmatpush1.msra.mxu0 0.0
    %177 = vmatprep.subr.mxu0 0.0
    %178 = vmatpush1.msra.mxu0 0.0
    %179 = vmatprep.subr.mxu0 0.0
    %180 = vmatpush1.msra.mxu0 0.0
    %181 = vmatprep.subr.mxu0 0.0
    %182 = vmatpush1.msra.mxu0 0.0
    %183 = vmatprep.subr.mxu0 0.0
    %184 = vmatpush1.msra.mxu0 0.0
    %185 = vmatprep.subr.mxu0 0.0
    %186 = vmatpush1.msra.mxu0 0.0
    %187 = vmatprep.subr.mxu0 0.0
    %188 = vmatpush1.msra.mxu0 0.0
    %189 = vmatprep.subr.mxu0 0.0
    %190 = vmatpush1.msra.mxu0 0.0
    %191 = vmatprep.subr.mxu0 0.0
    %192 = vmatpush1.msra.mxu0 0.0
    %193 = vmatprep.subr.mxu0 0.0
    %194 = vmatpush1.msra.mxu0 0.0
    %195 = vmatprep.subr.mxu0 0.0
    %196 = vmatpush1.msra.mxu0 0.0
    %197 = vmatprep.subr.mxu0 0.0
    %198 = vmatpush1.msra.mxu0 0.0
    %199 = vmatprep.subr.mxu0 0.0
    %200 = vmatpush1.msra.mxu0 0.0
    %201 = vmatprep.subr.mxu0 0.0
    %202 = vmatpush1.msra.mxu0 0.0
    %203 = vmatprep.subr.mxu0 0.0
    %204 = vmatpush1.msra.mxu0 0.0
    %205 = vmatprep.subr.mxu0 0.0
    %206 = vmatpush1.msra.mxu0 0.0
    %207 = vmatprep.subr.mxu0 0.0
    %208 = vmatpush1.msra.mxu0 0.0
    %209 = vmatprep.subr.mxu0 0.0
    %210 = vmatpush1.msra.mxu0 0.0
    %211 = vmatprep.subr.mxu0 0.0
    %212 = vmatpush1.msra.mxu0 0.0
    %213 = vmatprep.subr.mxu0 0.0
    %214 = vmatpush1.msra.mxu0 0.0
    %215 = vmatprep.subr.mxu0 0.0
    %216 = vmatpush1.msra.mxu0 0.0
    %217 = vmatprep.subr.mxu0 0.0
    %218 = vmatpush1.msra.mxu0 0.0
    %219 = vmatprep.subr.mxu0 0.0
    %220 = vmatpush1.msra.mxu0 0.0
    %221 = vmatprep.subr.mxu0 0.0
    %222 = vmatpush1.msra.mxu0 0.0
    %223 = vmatprep.mubr.f32.mxu0 0.0
    %224 = vmatmul.mubr.f32.gmra.mrb[0].mxu0 %v117
    %v225 = vpop.f32.mrb[0].mxu0
    %v226 = vadd.f32 %v53, %v225
    %v227 = vpop.f32.mrb[0].mxu0
    %228 = vmatprep.mubr.f32.mxu0 0.0
    %229 = vmatmul.mubr.f32.gmra.mrb[0].mxu0 %v120
    %v230 = vpop.f32.mrb[0].mxu0
    %v231 = vadd.f32 %v58, %v230
    %v232 = vpop.f32.mrb[0].mxu0
    %233 = vmatprep.mubr.f32.mxu0 0.0
    %234 = vmatmul.mubr.f32.gmra.mrb[0].mxu0 %v123
    %v235 = vpop.f32.mrb[0].mxu0
    %v236 = vadd.f32 %v63, %v235
    %v237 = vpop.f32.mrb[0].mxu0
    %238 = vmatprep.mubr.f32.mxu0 0.0
    %239 = vmatmul.mubr.f32.gmra.mrb[0].mxu0 %v126
    %v240 = vpop.f32.mrb[0].mxu0
    %v241 = vadd.f32 %v68, %v240
    %v242 = vpop.f32.mrb[0].mxu0
    %243 = vmatprep.mubr.f32.mxu0 0.0
    %244 = vmatmul.mubr.f32.gmra.mrb[0].mxu0 %v129
    %v245 = vpop.f32.mrb[0].mxu0
    %v246 = vadd.f32 %v73, %v245
    %v247 = vpop.f32.mrb[0].mxu0
    %248 = vmatprep.mubr.f32.mxu0 0.0
    %249 = vmatmul.mubr.f32.gmra.mrb[0].mxu0 %v132
    %v250 = vpop.f32.mrb[0].mxu0
    %v251 = vadd.f32 %v78, %v250
    %v252 = vpop.f32.mrb[0].mxu0
    %253 = vmatprep.mubr.f32.mxu0 0.0
    %254 = vmatmul.mubr.f32.gmra.mrb[0].mxu0 %v135
    %v255 = vpop.f32.mrb[0].mxu0
    %v256 = vadd.f32 %v83, %v255
    %v257 = vpop.f32.mrb[0].mxu0
    %258 = vmatprep.mubr.f32.mxu0 0.0
    %259 = vmatmul.mubr.f32.gmra.mrb[0].mxu0 %v138
    %v260 = vpop.f32.mrb[0].mxu0
    %v261 = vadd.f32 %v88, %v260
    %v262 = vpop.f32.mrb[0].mxu0
    %263 = vmatprep.mubr.f32.mxu0 0.0
    %264 = vmatmul.mubr.f32.gmra.mrb[0].mxu0 %v141
    %v265 = vpop.f32.mrb[0].mxu0
    %v266 = vadd.f32 %v93, %v265
    %v267 = vpop.f32.mrb[0].mxu0
    %268 = vmatprep.mubr.f32.mxu0 0.0
    %269 = vmatmul.mubr.f32.gmra.mrb[0].mxu0 %v144
    %v270 = vpop.f32.mrb[0].mxu0
    %v271 = vadd.f32 %v98, %v270
    %v272 = vpop.f32.mrb[0].mxu0
    %273 = vmatprep.mubr.f32.mxu0 0.0
    %274 = vmatmul.mubr.f32.gmra.mrb[0].mxu0 %v147
    %v275 = vpop.f32.mrb[0].mxu0
    %v276 = vadd.f32 %v103, %v275
    %v277 = vpop.f32.mrb[0].mxu0
    %278 = vmatprep.mubr.f32.mxu0 0.0
    %279 = vmatmul.mubr.f32.gmra.mrb[0].mxu0 %v150
    %v280 = vpop.f32.mrb[0].mxu0
    %v281 = vadd.f32 %v108, %v280
    %v282 = vpop.f32.mrb[0].mxu0
    %283 = vmatprep.mubr.f32.mxu0 0.0
    %284 = vmatmul.mubr.f32.gmra.mrb[0].mxu0 %v153
    %v285 = vpop.f32.mrb[0].mxu0
    %v286 = vadd.f32 %v113, %v285
    %v287 = vpop.f32.mrb[0].mxu0
    %288 = vdwg.mxu0
    %v289 = vmax.f32 %v226, 0.0
    %v290 = vmax.f32 %v231, 0.0
    %v291 = vmax.f32 %v236, 0.0
    %v292 = vmax.f32 %v241, 0.0
    %v293 = vmax.f32 %v246, 0.0
    %v294 = vmax.f32 %v251, 0.0
    %v295 = vmax.f32 %v256, 0.0
    %v296 = vmax.f32 %v261, 0.0
    %v297 = vmax.f32 %v266, 0.0
    %v298 = vmax.f32 %v271, 0.0
    %v299 = vmax.f32 %v276, 0.0
    %v300 = vmax.f32 %v281, 0.0
    %v301 = vmax.f32 %v286, 0.0
    %v302 = vld [vmem:[%s3] sm:$0xff]
    %v303 = vld [vmem:[%s3 + $0x8] sm:$0xff]
    %v304 = vld [vmem:[%s3 + $0x10] sm:$0xff]
    %v305 = vld [vmem:[%s3 + $0x18] sm:$0xff]
    %v306 = vld [vmem:[%s3 + $0x20] sm:$0xff]
    %v307 = vld [vmem:[%s3 + $0x28] sm:$0xff]
    %v308 = vld [vmem:[%s3 + $0x30] sm:$0xff]
    %v309 = vld [vmem:[%s3 + $0x38] sm:$0xff]
    %v310 = vld [vmem:[%s3 + $0x40] sm:$0xff]
    %v311 = vld [vmem:[%s3 + $0x48] sm:$0xff]
    %v312 = vld [vmem:[%s3 + $0x50] sm:$0xff]
    %v313 = vld [vmem:[%s3 + $0x58] sm:$0xff]
    %v314 = vld [vmem:[%s3 + $0x60] sm:$0xf]
    %316 = vset.pattern.permute.xlu0 0
    %317 = vperm.xlu0 %316, %v302
    %v318 = vpop.permute.xlu0 %317
    %321 = vset.pattern.permute.xlu0 0
    %322 = vperm.xlu0 %321, %v303
    %v323 = vpop.permute.xlu0 %322
    %326 = vset.pattern.permute.xlu0 0
    %327 = vperm.xlu0 %326, %v304
    %v328 = vpop.permute.xlu0 %327
    %331 = vset.pattern.permute.xlu0 0
    %332 = vperm.xlu0 %331, %v305
    %v333 = vpop.permute.xlu0 %332
    %336 = vset.pattern.permute.xlu0 0
    %337 = vperm.xlu0 %336, %v306
    %v338 = vpop.permute.xlu0 %337
    %341 = vset.pattern.permute.xlu0 0
    %342 = vperm.xlu0 %341, %v307
    %v343 = vpop.permute.xlu0 %342
    %346 = vset.pattern.permute.xlu0 0
    %347 = vperm.xlu0 %346, %v308
    %v348 = vpop.permute.xlu0 %347
    %351 = vset.pattern.permute.xlu0 0
    %352 = vperm.xlu0 %351, %v309
    %v353 = vpop.permute.xlu0 %352
    %356 = vset.pattern.permute.xlu0 0
    %357 = vperm.xlu0 %356, %v310
    %v358 = vpop.permute.xlu0 %357
    %361 = vset.pattern.permute.xlu0 0
    %362 = vperm.xlu0 %361, %v311
    %v363 = vpop.permute.xlu0 %362
    %366 = vset.pattern.permute.xlu0 0
    %367 = vperm.xlu0 %366, %v312
    %v368 = vpop.permute.xlu0 %367
    %371 = vset.pattern.permute.xlu0 0
    %372 = vperm.xlu0 %371, %v313
    %v373 = vpop.permute.xlu0 %372
    %376 = vset.pattern.permute.xlu0 0
    %377 = vperm.xlu0 %376, %v314
    %v378 = vpop.permute.xlu0 %377
    %v380 = vmul.f32 %v289, %v318
    %v381 = vmul.f32 %v290, %v323
    %v382 = vmul.f32 %v291, %v328
    %v383 = vmul.f32 %v292, %v333
    %v384 = vmul.f32 %v293, %v338
    %v385 = vmul.f32 %v294, %v343
    %v386 = vmul.f32 %v295, %v348
    %v387 = vmul.f32 %v296, %v353
    %v388 = vmul.f32 %v297, %v358
    %v389 = vmul.f32 %v298, %v363
    %v390 = vmul.f32 %v299, %v368
    %v391 = vmul.f32 %v300, %v373
    %v392 = vmul.f32 %v301, %v378
    %vm393 = vcmask 64512
    %v394 = vsel %vm393, %v380, 0.0
    %v395 = vsel %vm393, %v381, 0.0
    %v396 = vadd.f32 %v394, %v395
    %v397 = vsel %vm393, %v382, 0.0
    %v398 = vadd.f32 %v396, %v397
    %v399 = vsel %vm393, %v383, 0.0
    %v400 = vadd.f32 %v398, %v399
    %v401 = vsel %vm393, %v384, 0.0
    %v402 = vadd.f32 %v400, %v401
    %v403 = vsel %vm393, %v385, 0.0
    %v404 = vadd.f32 %v402, %v403
    %v405 = vsel %vm393, %v386, 0.0
    %v406 = vadd.f32 %v404, %v405
    %v407 = vsel %vm393, %v387, 0.0
    %v408 = vadd.f32 %v406, %v407
    %v409 = vsel %vm393, %v388, 0.0
    %v410 = vadd.f32 %v408, %v409
    %v411 = vsel %vm393, %v389, 0.0
    %v412 = vadd.f32 %v410, %v411
    %v413 = vsel %vm393, %v390, 0.0
    %v414 = vadd.f32 %v412, %v413
    %v415 = vsel %vm393, %v391, 0.0
    %v416 = vadd.f32 %v414, %v415
    %vm417 = vcmask 60416
    %v418 = vsel %vm417, %v392, 0.0
    %v419 = vadd.f32 %v416, %v418
    %v420 = vrot.slane %v419, 4
    %v421 = vadd.f32 %v419, %v420
    %v422 = vrot.slane %v421, 2
    %v423 = vadd.f32 %v421, %v422
    %v424 = vrot.slane %v423, 1
    %v425 = vadd.f32 %v423, %v424
    %v426 = vld [vmem:[#allocation2] sm:$0x1]
    %428 = vset.pattern.permute.xlu0 0
    %429 = vperm.xlu0 %428, %v426
    %v430 = vpop.permute.xlu0 %429
    %v432 = vlaneseq
    %v433 = vshrl.u32 %v432, 7
    %v434 = vsub.s32 0, %v433
    %v435 = vrot.slane %v430, %v434
    %v436 = vadd.f32 %v425, %v435
    %vm437 = vcmask 57344
    %438 = vst.msk [vmem:[#allocation3] sm:$0x1] %vm437, %v436
    // Predicated region
    $region22: #{lucas_machine_forward.1} parent=1 // pred_check
      _
    $region23: #{lucas_machine_forward.1} parent=1 // pred_check_branch
      %440 = sbr.rel (0) target = $region25
    $region24: #{lucas_machine_forward.1} parent=1 // pred_region
      %s442 = ssub.s32 16, 16
      %443 = vsyncadd [#allocation4], %s442
      %s445 = sshll.u32 [#allocation3], 4
      %s446 = int_to_ptr.vmem [resolvable:$true] %s445
      %448 = dma.vmem_to_hbm [thread:$0]  %s446, 16, %s5, [#allocation4]
    $region25: #{lucas_machine_forward.1} parent=1 // pred_fallthru
      _
    // Predicated region
    $region26: #{lucas_machine_forward.1} parent=1 // pred_check
      _
    $region27: #{lucas_machine_forward.1} parent=1 // pred_check_branch
      %450 = sbr.rel (0) target = $region29
    $region28: #{lucas_machine_forward.1} parent=1 // pred_region
      %451 = dma.done [#allocation4], 16
    $region29: #{lucas_machine_forward.1} parent=1 // pred_fallthru
      _
    %452 = vsyncpa [#allocation4], 1

</llo_original>
